<compile_context>
chip_gen: v7x
topology: tpu7x:2x2x1
jax: 0.10.0
libtpu: 0.0.40
codegen_flags: <defaults>
</compile_context>

<pallas_src>
import jax
import jax.numpy as jnp
from jax.experimental import pallas as pl
from jax.experimental.pallas import tpu as pltpu


# ----------------------------------------------------------------------------
# Kernels
# ----------------------------------------------------------------------------

def _qkv_fused_kernel(x_ref, w_ref, o_ref):
    # One row tile:  o = x @ [Wq^T | Wk^T | Wv^T], full C resident.
    # Native-dtype operands (bf16 stays bf16 on the MXU), f32 accumulation,
    # cast back on store.
    o_ref[...] = jnp.dot(
        x_ref[...], w_ref[...], preferred_element_type=jnp.float32
    ).astype(o_ref.dtype)


def _qkv_fused_ktiled_kernel(x_ref, w_ref, o_ref, acc_ref):
    # Same matmul with the channel (K) axis tiled; f32 accumulator in VMEM.
    @pl.when(pl.program_id(1) == 0)
    def _():
        acc_ref[...] = jnp.zeros_like(acc_ref)

    acc_ref[...] += jnp.dot(
        x_ref[...], w_ref[...], preferred_element_type=jnp.float32
    )

    @pl.when(pl.program_id(1) == pl.num_programs(1) - 1)
    def _():
        o_ref[...] = acc_ref[...].astype(o_ref.dtype)


# ----------------------------------------------------------------------------
# Parameter packing (done ONCE at init time, not per forward)
# ----------------------------------------------------------------------------

def pack_qkv_weights(wq, wk, wv, *, dtype=None, lane_multiple=128):
    """Build the fused, pre-transposed, lane-padded weight once.

    Args:
      wq: (dim_global, C)  PyTorch nn.Linear layout (out_features, in_features)
      wk: (dim_global, C)
      wv: (C, C)
      dtype: optional storage dtype (e.g. jnp.bfloat16 for bandwidth-bound use;
             must match the activation dtype passed to global_qkv).
    Returns:
      (C, round_up(2*dim_global + C, 128)) = [Wq^T | Wk^T | Wv^T | 0-pad]
    """
    w = jnp.concatenate([wq.T, wk.T, wv.T], axis=1)
    if dtype is not None:
        w = w.astype(dtype)
    pad = (-w.shape[1]) % lane_multiple
    if pad:
        # Keep the output slab a multiple of 128 lanes -> unmasked vst stores.
        w = jnp.pad(w, ((0, 0), (0, pad)))
    return w


# ----------------------------------------------------------------------------
# Tiling helpers
# ----------------------------------------------------------------------------

def _vmem_budget_bytes():
    # Generation-aware cap: ~75% of physical VMEM (v7x 64 MiB -> 48 MiB,
    # v5e/v6e 128 MiB -> 96 MiB).  Conservative fallback if the query is
    # unavailable (e.g. interpret mode / CPU AOT).
    try:
        cap = int(pltpu.get_tpu_info().vmem_capacity_bytes)
    except Exception:
        cap = 64 << 20
    return (cap * 3) // 4


def _pick_row_tile(rows, *, max_tile_rows, num_cores=2):
    """Row tile: 512-1024 sweet spot, >=4 grid steps per core when the problem
    is big enough, multiple of 128, even grid split for v7x's two TCs,
    bounded by the VMEM-derived cap."""
    if rows <= 512:
        return rows  # single tile; nothing to pipeline anyway
    cap = max(128, (max_tile_rows // 128) * 128)
    want = max(128, (rows // (4 * num_cores)) // 128 * 128)
    tm = min(max(want, 512), 1024, cap, (rows // 128) * 128)
    steps = pl.cdiv(rows, tm)
    if steps > 1 and steps % num_cores:
        for cand in (tm - 128, tm - 256, tm - 384):
            if cand >= 128 and pl.cdiv(rows, cand) % num_cores == 0:
                tm = cand
                break
    return tm


def _pick_k_tile(C, requested, auto_engage):
    """Channel tile for the K-accumulation path.  Only tiles that evenly
    divide C are safe (a partial K block would feed undefined pad data into
    the accumulation)."""
    cands = []
    if requested is not None:
        cands.append((int(requested) // 128) * 128)
    if requested is not None or auto_engage:
        cands += [512, 384, 256, 128]
    for tk in cands:
        if tk and 128 <= tk < C and C % tk == 0:
            return tk
    return None


# ----------------------------------------------------------------------------
# Forward
# ----------------------------------------------------------------------------

def global_qkv(x, wqkv_t, *, local_heads, global_heads,
               row_tile=None, k_tile=None, permute_heads=True):
    """Pallas implementation of Global_QKV.forward (qkv_bias=False).

    Args:
      x:       (B, N, C) activations.
      wqkv_t:  fused weight from pack_qkv_weights(); dtype MUST match x.
      permute_heads: True  -> (B, H, N, head_dim)   (PyTorch module layout)
                     False -> (B, N, H, head_dim)   (lane-dense; let the
                              consumer's BlockSpec do the permute for free)
    Returns:
      q, k, v.
    """
    B, N, C = x.shape
    if C % local_heads:
        raise ValueError(f"C={C} must be divisible by local_heads={local_heads}")
    head_dim = C // local_heads
    dim_global = head_dim * global_heads
    out_dim = 2 * dim_global + C
    out_dim_p = wqkv_t.shape[1]

    if wqkv_t.shape[0] != C or out_dim_p < out_dim:
        raise ValueError(f"wqkv_t shape {wqkv_t.shape} inconsistent with "
                         f"(C={C}, out_dim={out_dim}); use pack_qkv_weights().")
    if out_dim_p % 128:
        raise ValueError("fused weight width must be a multiple of 128 lanes; "
                         "use pack_qkv_weights() (it pads for you).")
    if wqkv_t.dtype != x.dtype:
        raise ValueError(
            f"wqkv_t.dtype ({wqkv_t.dtype}) must match x.dtype ({x.dtype}); a "
            "mismatch silently promotes inside the matmul and doubles weight "
            "DMA.  Re-pack with pack_qkv_weights(..., dtype=x.dtype).")

    rows = B * N
    x2 = x.reshape(rows, C)

    in_b = jnp.dtype(x.dtype).itemsize
    w_b = jnp.dtype(wqkv_t.dtype).itemsize
    out_b = in_b  # output dtype == x dtype
    budget = _vmem_budget_bytes()
    headroom = 2 << 20

    # Channel tiling: engage when the (double-buffered) resident fused weight
    # would eat more than ~1/3 of the VMEM budget (v7x-critical), or when
    # explicitly requested.
    auto_engage = 2 * C * out_dim_p * w_b > budget // 3
    tk = _pick_k_tile(C, k_tile, auto_engage)
    use_k_tiling = tk is not None

    if use_k_tiling:
        weight_bytes = 2 * tk * out_dim_p * w_b
        per_row = 2 * (tk * in_b + out_dim_p * out_b) + 4 * out_dim_p  # + f32 acc
    else:
        tk = C
        weight_bytes = 2 * C * out_dim_p * w_b
        per_row = 2 * (C * in_b + out_dim_p * out_b)

    max_tile_rows = max(128, (budget - weight_bytes - headroom) // per_row)
    if row_tile is not None:
        tm = rows if row_tile >= rows else max(128, (int(row_tile) // 128) * 128)
    else:
        tm = _pick_row_tile(rows, max_tile_rows=max_tile_rows)

    # Explicit, per-operand-dtype VMEM budget (double-buffered tiles + scratch).
    need = weight_bytes + tm * per_row + headroom
    vmem_limit = int(min(max(need * 5 // 4, 16 << 20), budget))

    # Advisory cost estimate so XLA overlaps neighbours with this HBM-bound op.
    cost = pl.CostEstimate(
        flops=2 * rows * C * out_dim_p,
        transcendentals=0,
        bytes_accessed=(rows * C * in_b + C * out_dim_p * w_b
                        + rows * out_dim_p * out_b),
    )

    out_shape = jax.ShapeDtypeStruct((rows, out_dim_p), x.dtype)

    if use_k_tiling:
        grid = (pl.cdiv(rows, tm), pl.cdiv(C, tk))
        qkv2 = pl.pallas_call(
            _qkv_fused_ktiled_kernel,
            out_shape=out_shape,
            grid=grid,
            in_specs=[
                pl.BlockSpec((tm, tk), lambda i, j: (i, j)),          # x rows/chans
                pl.BlockSpec((tk, out_dim_p), lambda i, j: (j, 0)),   # weight slab
            ],
            out_specs=pl.BlockSpec((tm, out_dim_p), lambda i, j: (i, 0)),
            scratch_shapes=[pltpu.VMEM((tm, out_dim_p), jnp.float32)],
            compiler_params=pltpu.CompilerParams(
                dimension_semantics=("parallel", "arbitrary"),
                vmem_limit_bytes=vmem_limit,
            ),
            cost_estimate=cost,
        )(x2, wqkv_t)
    else:
        grid = (pl.cdiv(rows, tm),)
        qkv2 = pl.pallas_call(
            _qkv_fused_kernel,
            out_shape=out_shape,
            grid=grid,
            in_specs=[
                pl.BlockSpec((tm, C), lambda i: (i, 0)),              # streaming rows
                # Grid-invariant weight: constant index_map -> fetched once.
                pl.BlockSpec((C, out_dim_p), lambda i: (0, 0)),
            ],
            out_specs=pl.BlockSpec((tm, out_dim_p), lambda i: (i, 0)),  # lane-dense
            compiler_params=pltpu.CompilerParams(
                dimension_semantics=("parallel",),                    # v7x: both TCs
                vmem_limit_bytes=vmem_limit,
            ),
            cost_estimate=cost,
        )(x2, wqkv_t)

    # Split the fused lane-dense slab (any pad columns are dropped here).
    qkv3 = qkv2.reshape(B, N, out_dim_p)
    q = qkv3[..., :dim_global].reshape(B, N, global_heads, head_dim)
    k = qkv3[..., dim_global:2 * dim_global].reshape(B, N, global_heads, head_dim)
    v = qkv3[..., 2 * dim_global:out_dim].reshape(B, N, local_heads, head_dim)

    if permute_heads:
        # Match the PyTorch module exactly: (B, H, N, head_dim).
        # TODO(synk): downstream attention kernels should call with
        # permute_heads=False and absorb this permute into their BlockSpec
        # index_map (saves a full HBM round-trip on an HBM-bound op).
        q = q.transpose(0, 2, 1, 3)
        k = k.transpose(0, 2, 1, 3)
        v = v.transpose(0, 2, 1, 3)
    return q, k, v


# ----------------------------------------------------------------------------
# Self-test
# ----------------------------------------------------------------------------

if __name__ == "__main__":
    def run_case(name, key, *, B, N, C, local_heads, global_heads,
                 dtype=jnp.float32, row_tile=None, k_tile=None, tol=1e-3):
        hd = C // local_heads
        dg = hd * global_heads
        kx, kq, kk, kv = jax.random.split(key, 4)
        scale = C ** -0.5
        x = jax.random.normal(kx, (B, N, C), dtype=jnp.float32)
        wq = jax.random.uniform(kq, (dg, C), jnp.float32, -scale, scale)
        wk = jax.random.uniform(kk, (dg, C), jnp.float32, -scale, scale)
        wv = jax.random.uniform(kv, (C, C), jnp.float32, -scale, scale)

        # Packed / padded / dtype-cast ONCE (parameter-init time), not per call.
        xk = x.astype(dtype)
        wqkv_t = pack_qkv_weights(wq, wk, wv, dtype=dtype)

        q, k, v = global_qkv(xk, wqkv_t, local_heads=local_heads,
                             global_heads=global_heads,
                             row_tile=row_tile, k_tile=k_tile)
        jax.block_until_ready((q, k, v))

        # Pure-JAX reference of the PyTorch forward (f32 inputs).
        q_ref = (x @ wq.T).reshape(B, N, global_heads, hd).transpose(0, 2, 1, 3)
        k_ref = (x @ wk.T).reshape(B, N, global_heads, hd).transpose(0, 2, 1, 3)
        v_ref = (x @ wv.T).reshape(B, N, local_heads, hd).transpose(0, 2, 1, 3)

        assert q.shape == (B, global_heads, N, hd), (name, q.shape)
        assert k.shape == (B, global_heads, N, hd), (name, k.shape)
        assert v.shape == (B, local_heads, N, hd), (name, v.shape)
        for got, want in ((q, q_ref), (k, k_ref), (v, v_ref)):
            assert jnp.allclose(got.astype(jnp.float32), want,
                                atol=tol, rtol=tol), name

        # Lane-dense (B, N, H, hd) fast path: same numbers, heads-last layout.
        q2, k2, v2 = global_qkv(xk, wqkv_t, local_heads=local_heads,
                                global_heads=global_heads,
                                row_tile=row_tile, k_tile=k_tile,
                                permute_heads=False)
        jax.block_until_ready((q2, k2, v2))
        assert q2.shape == (B, N, global_heads, hd), (name, q2.shape)
        assert jnp.allclose(q2.transpose(0, 2, 1, 3).astype(jnp.float32), q_ref,
                            atol=tol, rtol=tol), name
        assert jnp.allclose(v2.transpose(0, 2, 1, 3).astype(jnp.float32), v_ref,
                            atol=tol, rtol=tol), name

    key = jax.random.PRNGKey(0)
    k1, k2_, k3, k4 = jax.random.split(key, 4)

    # 1) Module config from the spec: dim=128, 8 local / 4 global heads.
    run_case("base_f32", k1, B=2, N=128, C=128, local_heads=8, global_heads=4)

    # 2) Same config, forced multi-step row grid (exercises the pipeline and
    #    the v7x dual-TC "parallel" axis).
    run_case("tiled_rows", k2_, B=2, N=128, C=128, local_heads=8, global_heads=4,
             row_tile=128)

    # 3) Wider channels, non-multiple-of-128 fused width (pad path, out_dim=448)
    #    and forced channel (K) tiling through the accumulator kernel.
    run_case("ktiled_padded", k3, B=2, N=64, C=256, local_heads=8, global_heads=3,
             k_tile=128)

    # 4) bf16 data path (halves HBM traffic; native bf16 MXU on v5e/v6e/v7x).
    run_case("bf16", k4, B=2, N=128, C=128, local_heads=8, global_heads=4,
             dtype=jnp.bfloat16, tol=5e-2)

    print("KERNEL_OK")
</pallas_src>

<mosaic_0001>
module attributes {stable_mosaic.version = 11 : i64} {
  func.func @_qkv_fused_kernel(%arg0: i32, %arg1: memref<256x128xf32, #tpu.memory_space<vmem>>, %arg2: memref<128x256xf32, #tpu.memory_space<vmem>>, %arg3: memref<256x256xf32, #tpu.memory_space<vmem>>) attributes {dimension_semantics = [#tpu.dimension_semantics<parallel>], iteration_bounds = array<i64: 1>, scalar_prefetch = 0 : i64, scratch_operands = 0 : i64, tpu.core_type = #tpu.core_type<tc>, window_params = [{transform_indices = @transform_0, window_bounds = array<i64: 256, 128>}, {pipeline_mode = #tpu.pipeline_mode<synchronous>, transform_indices = @transform_1, window_bounds = array<i64: 128, 256>}, {transform_indices = @transform_2, window_bounds = array<i64: 256, 256>}]} {
    %c0 = arith.constant 0 : index
    %c0_0 = arith.constant 0 : index
    %0 = vector.load %arg1[%c0, %c0_0] : memref<256x128xf32, #tpu.memory_space<vmem>>, vector<256x128xf32>
    %c0_1 = arith.constant 0 : index
    %c0_2 = arith.constant 0 : index
    %1 = vector.load %arg2[%c0_1, %c0_2] : memref<128x256xf32, #tpu.memory_space<vmem>>, vector<128x256xf32>
    %cst = arith.constant dense<0.000000e+00> : vector<256x256xf32>
    %2 = tpu.matmul %0, %1, %cst {dimension_numbers = #tpu.dot_dimension_numbers<[1], [0], [0], [1], [0, 0, 1, 1], [], []>} : vector<256x128xf32>, vector<128x256xf32>, vector<256x256xf32> -> vector<256x256xf32>
    %c0_3 = arith.constant 0 : index
    %c0_4 = arith.constant 0 : index
    %3 = vector.load %arg3[%c0_3, %c0_4] : memref<256x256xf32, #tpu.memory_space<vmem>>, vector<256x256xf32>
    tpu.vector_store %arg3[%c0_3, %c0_4], %2 {strides = array<i32>} : memref<256x256xf32, #tpu.memory_space<vmem>>, vector<256x256xf32>,
    return
  }
  func.func @transform_0(%arg0: i32) -> (i32, i32) {
    %c0_i32 = arith.constant 0 : i32
    %c0_i32_0 = arith.constant 0 : i32
    return %arg0, %c0_i32 : i32, i32
  }
  func.func @transform_1(%arg0: i32) -> (i32, i32) {
    %c0_i32 = arith.constant 0 : i32
    %c0_i32_0 = arith.constant 0 : i32
    %c0_i32_1 = arith.constant 0 : i32
    return %c0_i32, %c0_i32_0 : i32, i32
  }
  func.func @transform_2(%arg0: i32) -> (i32, i32) {
    %c0_i32 = arith.constant 0 : i32
    %c0_i32_0 = arith.constant 0 : i32
    return %arg0, %c0_i32 : i32, i32
  }
}

</mosaic_0001>

<llo_original>
// kernel: tpu_custom_call.1
$region0: #{tpu_custom_call.1}
  #allocation0 [shape = 'u32[]', space=smem, size = 0x4, offset = 0x4, fixed_abs, tag = 'smem constant byte address 0x4 - core index']
  #allocation1 [shape = 'u32[144,128]{1,0:T(1,128)}', space=vmem, size = 0x12000, scoped, tag = 'internal scratch']
  %s0 = inlined_call_operand.hbm [shape: f32[256,128], index: 0, kind: input, shape index: {}]
  %s1 = inlined_call_operand.hbm [shape: f32[128,256], index: 1, kind: input, shape index: {}]
  %s2 = inlined_call_operand.hbm [shape: f32[256,256], index: 2, kind: output, shape index: {}]
  %s3 = sld [smem:[#allocation0]]
  $region26: #{tpu_custom_call.1} parent=0
    _
  %s5 = ssub.s32 1, %s3
  %s6 = scalar_select 0, %s5, %s3
  $region1: #{tpu_custom_call.1} parent=0
    #allocation2 [shape = 'u8[131072]{0}', space=vmem, size = 0x20000, scoped, tag = 'input window, operand 0, single buffered']
    #allocation3 [shape = 's32[1]{0}', space=sflag, size = 0x4, scoped, tag = 'scoped memory for tpu_custom_call.1']
    #allocation4 [shape = 's32[1]{0}', space=sflag, size = 0x4, scoped, tag = 'scoped memory for tpu_custom_call.1']
    #allocation5 [shape = 'u8[131072]{0}', space=vmem, size = 0x20000, scoped, tag = 'input window, operand 1, single buffered']
    #allocation6 [shape = 's32[1]{0}', space=sflag, size = 0x4, scoped, tag = 'scoped memory for tpu_custom_call.1']
    #allocation7 [shape = 'u8[262144]{0}', space=vmem, size = 0x40000, scoped, tag = 'output window, operand 0, single buffered']
    %7 = vsyncpa [#allocation3], 0
    %8 = vsyncpa [#allocation6], 0
    %9 = vsyncpa [#allocation4], 0
    // Predicated region
    $region2: #{tpu_custom_call.1} parent=1 // pred_check
      _
    $region3: #{tpu_custom_call.1} parent=1 // pred_check_branch
      %11 = sbr.rel (0) target = $region5
    $region4: #{tpu_custom_call.1} parent=1 // pred_region
      %s13 = ssub.s32 4096, 4096
      %14 = vsyncadd [#allocation3], %s13
      %s15 = sshll.u32 [#allocation2], 4
      %s16 = int_to_ptr.vmem [resolvable:$true] %s15
      %21 = dma.hbm_to_vmem [thread:$0]  %s0, 4096, %s16, [#allocation3], 128, 128, 8
    $region5: #{tpu_custom_call.1} parent=1 // pred_fallthru
      _
    // Predicated region
    $region6: #{tpu_custom_call.1} parent=1 // pred_check
      _
    $region7: #{tpu_custom_call.1} parent=1 // pred_check_branch
      %23 = sbr.rel (0) target = $region9
    $region8: #{tpu_custom_call.1} parent=1 // pred_region
      %s25 = ssub.s32 4096, 4096
      %26 = vsyncadd [#allocation6], %s25
      %s27 = sshll.u32 [#allocation5], 4
      %s28 = int_to_ptr.vmem [resolvable:$true] %s27
      %33 = dma.hbm_to_vmem [thread:$0]  %s1, 4096, %s28, [#allocation6], 256, 256, 16
    $region9: #{tpu_custom_call.1} parent=1 // pred_fallthru
      _
    // Predicated region
    $region10: #{tpu_custom_call.1} parent=1 // pred_check
      _
    $region11: #{tpu_custom_call.1} parent=1 // pred_check_branch
      %35 = sbr.rel (0) target = $region13
    $region12: #{tpu_custom_call.1} parent=1 // pred_region
      %36 = dma.done [#allocation3], 4096
    $region13: #{tpu_custom_call.1} parent=1 // pred_fallthru
      _
    // Predicated region
    $region14: #{tpu_custom_call.1} parent=1 // pred_check
      _
    $region15: #{tpu_custom_call.1} parent=1 // pred_check_branch
      %38 = sbr.rel (0) target = $region17
    $region16: #{tpu_custom_call.1} parent=1 // pred_region
      %39 = dma.done [#allocation6], 4096
    $region17: #{tpu_custom_call.1} parent=1 // pred_fallthru
      _
    %v40 = vld [vmem:[#allocation2] sm:$0xff]
    %v41 = vld [vmem:[#allocation2 + $0x8] sm:$0xff]
    %v42 = vld [vmem:[#allocation2 + $0x10] sm:$0xff]
    %v43 = vld [vmem:[#allocation2 + $0x18] sm:$0xff]
    %v44 = vld [vmem:[#allocation2 + $0x20] sm:$0xff]
    %v45 = vld [vmem:[#allocation2 + $0x28] sm:$0xff]
    %v46 = vld [vmem:[#allocation2 + $0x30] sm:$0xff]
    %v47 = vld [vmem:[#allocation2 + $0x38] sm:$0xff]
    %v48 = vld [vmem:[#allocation2 + $0x40] sm:$0xff]
    %v49 = vld [vmem:[#allocation2 + $0x48] sm:$0xff]
    %v50 = vld [vmem:[#allocation2 + $0x50] sm:$0xff]
    %v51 = vld [vmem:[#allocation2 + $0x58] sm:$0xff]
    %v52 = vld [vmem:[#allocation2 + $0x60] sm:$0xff]
    %v53 = vld [vmem:[#allocation2 + $0x68] sm:$0xff]
    %v54 = vld [vmem:[#allocation2 + $0x70] sm:$0xff]
    %v55 = vld [vmem:[#allocation2 + $0x78] sm:$0xff]
    %v56 = vld [vmem:[#allocation2 + $0x80] sm:$0xff]
    %v57 = vld [vmem:[#allocation2 + $0x88] sm:$0xff]
    %v58 = vld [vmem:[#allocation2 + $0x90] sm:$0xff]
    %v59 = vld [vmem:[#allocation2 + $0x98] sm:$0xff]
    %v60 = vld [vmem:[#allocation2 + $0xa0] sm:$0xff]
    %v61 = vld [vmem:[#allocation2 + $0xa8] sm:$0xff]
    %v62 = vld [vmem:[#allocation2 + $0xb0] sm:$0xff]
    %v63 = vld [vmem:[#allocation2 + $0xb8] sm:$0xff]
    %v64 = vld [vmem:[#allocation2 + $0xc0] sm:$0xff]
    %v65 = vld [vmem:[#allocation2 + $0xc8] sm:$0xff]
    %v66 = vld [vmem:[#allocation2 + $0xd0] sm:$0xff]
    %v67 = vld [vmem:[#allocation2 + $0xd8] sm:$0xff]
    %v68 = vld [vmem:[#allocation2 + $0xe0] sm:$0xff]
    %v69 = vld [vmem:[#allocation2 + $0xe8] sm:$0xff]
    %v70 = vld [vmem:[#allocation2 + $0xf0] sm:$0xff]
    %v71 = vld [vmem:[#allocation2 + $0xf8] sm:$0xff]
    %v72 = vld [vmem:[#allocation5] sm:$0xff]
    %v73 = vld [vmem:[#allocation5 + $0x8] sm:$0xff]
    %v74 = vld [vmem:[#allocation5 + $0x10] sm:$0xff]
    %v75 = vld [vmem:[#allocation5 + $0x18] sm:$0xff]
    %v76 = vld [vmem:[#allocation5 + $0x20] sm:$0xff]
    %v77 = vld [vmem:[#allocation5 + $0x28] sm:$0xff]
    %v78 = vld [vmem:[#allocation5 + $0x30] sm:$0xff]
    %v79 = vld [vmem:[#allocation5 + $0x38] sm:$0xff]
    %v80 = vld [vmem:[#allocation5 + $0x40] sm:$0xff]
    %v81 = vld [vmem:[#allocation5 + $0x48] sm:$0xff]
    %v82 = vld [vmem:[#allocation5 + $0x50] sm:$0xff]
    %v83 = vld [vmem:[#allocation5 + $0x58] sm:$0xff]
    %v84 = vld [vmem:[#allocation5 + $0x60] sm:$0xff]
    %v85 = vld [vmem:[#allocation5 + $0x68] sm:$0xff]
    %v86 = vld [vmem:[#allocation5 + $0x70] sm:$0xff]
    %v87 = vld [vmem:[#allocation5 + $0x78] sm:$0xff]
    %v88 = vld [vmem:[#allocation5 + $0x80] sm:$0xff]
    %v89 = vld [vmem:[#allocation5 + $0x88] sm:$0xff]
    %v90 = vld [vmem:[#allocation5 + $0x90] sm:$0xff]
    %v91 = vld [vmem:[#allocation5 + $0x98] sm:$0xff]
    %v92 = vld [vmem:[#allocation5 + $0xa0] sm:$0xff]
    %v93 = vld [vmem:[#allocation5 + $0xa8] sm:$0xff]
    %v94 = vld [vmem:[#allocation5 + $0xb0] sm:$0xff]
    %v95 = vld [vmem:[#allocation5 + $0xb8] sm:$0xff]
    %v96 = vld [vmem:[#allocation5 + $0xc0] sm:$0xff]
    %v97 = vld [vmem:[#allocation5 + $0xc8] sm:$0xff]
    %v98 = vld [vmem:[#allocation5 + $0xd0] sm:$0xff]
    %v99 = vld [vmem:[#allocation5 + $0xd8] sm:$0xff]
    %v100 = vld [vmem:[#allocation5 + $0xe0] sm:$0xff]
    %v101 = vld [vmem:[#allocation5 + $0xe8] sm:$0xff]
    %v102 = vld [vmem:[#allocation5 + $0xf0] sm:$0xff]
    %v103 = vld [vmem:[#allocation5 + $0xf8] sm:$0xff]
    %104 = vmatprep.subr.mxu0 %v73
    %105 = vmatpush1.msra.mxu0 %v72
    %106 = vmatprep.subr.mxu0 %v75
    %107 = vmatpush1.msra.mxu0 %v74
    %108 = vmatprep.subr.mxu0 %v77
    %109 = vmatpush1.msra.mxu0 %v76
    %110 = vmatprep.subr.mxu0 %v79
    %111 = vmatpush1.msra.mxu0 %v78
    %112 = vmatprep.subr.mxu0 %v81
    %113 = vmatpush1.msra.mxu0 %v80
    %114 = vmatprep.subr.mxu0 %v83
    %115 = vmatpush1.msra.mxu0 %v82
    %116 = vmatprep.subr.mxu0 %v85
    %117 = vmatpush1.msra.mxu0 %v84
    %118 = vmatprep.subr.mxu0 %v87
    %119 = vmatpush1.msra.mxu0 %v86
    %120 = vmatprep.subr.mxu0 %v89
    %121 = vmatpush1.msra.mxu0 %v88
    %122 = vmatprep.subr.mxu0 %v91
    %123 = vmatpush1.msra.mxu0 %v90
    %124 = vmatprep.subr.mxu0 %v93
    %125 = vmatpush1.msra.mxu0 %v92
    %126 = vmatprep.subr.mxu0 %v95
    %127 = vmatpush1.msra.mxu0 %v94
    %128 = vmatprep.subr.mxu0 %v97
    %129 = vmatpush1.msra.mxu0 %v96
    %130 = vmatprep.subr.mxu0 %v99
    %131 = vmatpush1.msra.mxu0 %v98
    %132 = vmatprep.subr.mxu0 %v101
    %133 = vmatpush1.msra.mxu0 %v100
    %134 = vmatprep.subr.mxu0 %v103
    %135 = vmatpush1.msra.mxu0 %v102
    %136 = vmatprep.subr.mxu0 0.0
    %137 = vmatpush1.msra.mxu0 0.0
    %138 = vmatprep.subr.mxu0 0.0
    %139 = vmatpush1.msra.mxu0 0.0
    %140 = vmatprep.subr.mxu0 0.0
    %141 = vmatpush1.msra.mxu0 0.0
    %142 = vmatprep.subr.mxu0 0.0
    %143 = vmatpush1.msra.mxu0 0.0
    %144 = vmatprep.subr.mxu0 0.0
    %145 = vmatpush1.msra.mxu0 0.0
    %146 = vmatprep.subr.mxu0 0.0
    %147 = vmatpush1.msra.mxu0 0.0
    %148 = vmatprep.subr.mxu0 0.0
    %149 = vmatpush1.msra.mxu0 0.0
    %150 = vmatprep.subr.mxu0 0.0
    %151 = vmatpush1.msra.mxu0 0.0
    %152 = vmatprep.subr.mxu0 0.0
    %153 = vmatpush1.msra.mxu0 0.0
    %154 = vmatprep.subr.mxu0 0.0
    %155 = vmatpush1.msra.mxu0 0.0
    %156 = vmatprep.subr.mxu0 0.0
    %157 = vmatpush1.msra.mxu0 0.0
    %158 = vmatprep.subr.mxu0 0.0
    %159 = vmatpush1.msra.mxu0 0.0
    %160 = vmatprep.subr.mxu0 0.0
    %161 = vmatpush1.msra.mxu0 0.0
    %162 = vmatprep.subr.mxu0 0.0
    %163 = vmatpush1.msra.mxu0 0.0
    %164 = vmatprep.subr.mxu0 0.0
    %165 = vmatpush1.msra.mxu0 0.0
    %166 = vmatprep.subr.mxu0 0.0
    %167 = vmatpush1.msra.mxu0 0.0
    %168 = vmatprep.mubr.f32.mxu0 0.0
    %169 = vmatmul.mubr.f32.gmra.mrb[0].mxu0 %v40
    %v170 = vpop.f32.mrb[0].mxu0
    %v171 = vadd.f32 0.0, %v170
    %v172 = vpop.f32.mrb[0].mxu0
    %v173 = vadd.f32 0.0, %v172
    %174 = vmatprep.mubr.f32.mxu0 0.0
    %175 = vmatmul.mubr.f32.gmra.mrb[0].mxu0 %v41
    %v176 = vpop.f32.mrb[0].mxu0
    %v177 = vadd.f32 0.0, %v176
    %v178 = vpop.f32.mrb[0].mxu0
    %v179 = vadd.f32 0.0, %v178
    %180 = vmatprep.mubr.f32.mxu0 0.0
    %181 = vmatmul.mubr.f32.gmra.mrb[0].mxu0 %v42
    %v182 = vpop.f32.mrb[0].mxu0
    %v183 = vadd.f32 0.0, %v182
    %v184 = vpop.f32.mrb[0].mxu0
    %v185 = vadd.f32 0.0, %v184
    %186 = vmatprep.mubr.f32.mxu0 0.0
    %187 = vmatmul.mubr.f32.gmra.mrb[0].mxu0 %v43
    %v188 = vpop.f32.mrb[0].mxu0
    %v189 = vadd.f32 0.0, %v188
    %v190 = vpop.f32.mrb[0].mxu0
    %v191 = vadd.f32 0.0, %v190
    %192 = vmatprep.mubr.f32.mxu0 0.0
    %193 = vmatmul.mubr.f32.gmra.mrb[0].mxu0 %v44
    %v194 = vpop.f32.mrb[0].mxu0
    %v195 = vadd.f32 0.0, %v194
    %v196 = vpop.f32.mrb[0].mxu0
    %v197 = vadd.f32 0.0, %v196
    %198 = vmatprep.mubr.f32.mxu0 0.0
    %199 = vmatmul.mubr.f32.gmra.mrb[0].mxu0 %v45
    %v200 = vpop.f32.mrb[0].mxu0
    %v201 = vadd.f32 0.0, %v200
    %v202 = vpop.f32.mrb[0].mxu0
    %v203 = vadd.f32 0.0, %v202
    %204 = vmatprep.mubr.f32.mxu0 0.0
    %205 = vmatmul.mubr.f32.gmra.mrb[0].mxu0 %v46
    %v206 = vpop.f32.mrb[0].mxu0
    %v207 = vadd.f32 0.0, %v206
    %v208 = vpop.f32.mrb[0].mxu0
    %v209 = vadd.f32 0.0, %v208
    %210 = vmatprep.mubr.f32.mxu0 0.0
    %211 = vmatmul.mubr.f32.gmra.mrb[0].mxu0 %v47
    %v212 = vpop.f32.mrb[0].mxu0
    %v213 = vadd.f32 0.0, %v212
    %v214 = vpop.f32.mrb[0].mxu0
    %v215 = vadd.f32 0.0, %v214
    %216 = vmatprep.mubr.f32.mxu0 0.0
    %217 = vmatmul.mubr.f32.gmra.mrb[0].mxu0 %v48
    %v218 = vpop.f32.mrb[0].mxu0
    %v219 = vadd.f32 0.0, %v218
    %v220 = vpop.f32.mrb[0].mxu0
    %v221 = vadd.f32 0.0, %v220
    %222 = vmatprep.mubr.f32.mxu0 0.0
    %223 = vmatmul.mubr.f32.gmra.mrb[0].mxu0 %v49
    %v224 = vpop.f32.mrb[0].mxu0
    %v225 = vadd.f32 0.0, %v224
    %v226 = vpop.f32.mrb[0].mxu0
    %v227 = vadd.f32 0.0, %v226
    %228 = vmatprep.mubr.f32.mxu0 0.0
    %229 = vmatmul.mubr.f32.gmra.mrb[0].mxu0 %v50
    %v230 = vpop.f32.mrb[0].mxu0
    %v231 = vadd.f32 0.0, %v230
    %v232 = vpop.f32.mrb[0].mxu0
    %v233 = vadd.f32 0.0, %v232
    %234 = vmatprep.mubr.f32.mxu0 0.0
    %235 = vmatmul.mubr.f32.gmra.mrb[0].mxu0 %v51
    %v236 = vpop.f32.mrb[0].mxu0
    %v237 = vadd.f32 0.0, %v236
    %v238 = vpop.f32.mrb[0].mxu0
    %v239 = vadd.f32 0.0, %v238
    %240 = vmatprep.mubr.f32.mxu0 0.0
    %241 = vmatmul.mubr.f32.gmra.mrb[0].mxu0 %v52
    %v242 = vpop.f32.mrb[0].mxu0
    %v243 = vadd.f32 0.0, %v242
    %v244 = vpop.f32.mrb[0].mxu0
    %v245 = vadd.f32 0.0, %v244
    %246 = vmatprep.mubr.f32.mxu0 0.0
    %247 = vmatmul.mubr.f32.gmra.mrb[0].mxu0 %v53
    %v248 = vpop.f32.mrb[0].mxu0
    %v249 = vadd.f32 0.0, %v248
    %v250 = vpop.f32.mrb[0].mxu0
    %v251 = vadd.f32 0.0, %v250
    %252 = vmatprep.mubr.f32.mxu0 0.0
    %253 = vmatmul.mubr.f32.gmra.mrb[0].mxu0 %v54
    %v254 = vpop.f32.mrb[0].mxu0
    %v255 = vadd.f32 0.0, %v254
    %v256 = vpop.f32.mrb[0].mxu0
    %v257 = vadd.f32 0.0, %v256
    %258 = vmatprep.mubr.f32.mxu0 0.0
    %259 = vmatmul.mubr.f32.gmra.mrb[0].mxu0 %v55
    %v260 = vpop.f32.mrb[0].mxu0
    %v261 = vadd.f32 0.0, %v260
    %v262 = vpop.f32.mrb[0].mxu0
    %v263 = vadd.f32 0.0, %v262
    %264 = vmatprep.mubr.f32.mxu0 0.0
    %265 = vmatmul.mubr.f32.gmra.mrb[0].mxu0 %v56
    %v266 = vpop.f32.mrb[0].mxu0
    %v267 = vadd.f32 0.0, %v266
    %v268 = vpop.f32.mrb[0].mxu0
    %v269 = vadd.f32 0.0, %v268
    %270 = vmatprep.mubr.f32.mxu0 0.0
    %271 = vmatmul.mubr.f32.gmra.mrb[0].mxu0 %v57
    %v272 = vpop.f32.mrb[0].mxu0
    %v273 = vadd.f32 0.0, %v272
    %v274 = vpop.f32.mrb[0].mxu0
    %v275 = vadd.f32 0.0, %v274
    %276 = vmatprep.mubr.f32.mxu0 0.0
    %277 = vmatmul.mubr.f32.gmra.mrb[0].mxu0 %v58
    %v278 = vpop.f32.mrb[0].mxu0
    %v279 = vadd.f32 0.0, %v278
    %v280 = vpop.f32.mrb[0].mxu0
    %v281 = vadd.f32 0.0, %v280
    %282 = vmatprep.mubr.f32.mxu0 0.0
    %283 = vmatmul.mubr.f32.gmra.mrb[0].mxu0 %v59
    %v284 = vpop.f32.mrb[0].mxu0
    %v285 = vadd.f32 0.0, %v284
    %v286 = vpop.f32.mrb[0].mxu0
    %v287 = vadd.f32 0.0, %v286
    %288 = vmatprep.mubr.f32.mxu0 0.0
    %289 = vmatmul.mubr.f32.gmra.mrb[0].mxu0 %v60
    %v290 = vpop.f32.mrb[0].mxu0
    %v291 = vadd.f32 0.0, %v290
    %v292 = vpop.f32.mrb[0].mxu0
    %v293 = vadd.f32 0.0, %v292
    %294 = vmatprep.mubr.f32.mxu0 0.0
    %295 = vmatmul.mubr.f32.gmra.mrb[0].mxu0 %v61
    %v296 = vpop.f32.mrb[0].mxu0
    %v297 = vadd.f32 0.0, %v296
    %v298 = vpop.f32.mrb[0].mxu0
    %v299 = vadd.f32 0.0, %v298
    %300 = vmatprep.mubr.f32.mxu0 0.0
    %301 = vmatmul.mubr.f32.gmra.mrb[0].mxu0 %v62
    %v302 = vpop.f32.mrb[0].mxu0
    %v303 = vadd.f32 0.0, %v302
    %v304 = vpop.f32.mrb[0].mxu0
    %v305 = vadd.f32 0.0, %v304
    %306 = vmatprep.mubr.f32.mxu0 0.0
    %307 = vmatmul.mubr.f32.gmra.mrb[0].mxu0 %v63
    %v308 = vpop.f32.mrb[0].mxu0
    %v309 = vadd.f32 0.0, %v308
    %v310 = vpop.f32.mrb[0].mxu0
    %v311 = vadd.f32 0.0, %v310
    %312 = vmatprep.mubr.f32.mxu0 0.0
    %313 = vmatmul.mubr.f32.gmra.mrb[0].mxu0 %v64
    %v314 = vpop.f32.mrb[0].mxu0
    %v315 = vadd.f32 0.0, %v314
    %v316 = vpop.f32.mrb[0].mxu0
    %v317 = vadd.f32 0.0, %v316
    %318 = vmatprep.mubr.f32.mxu0 0.0
    %319 = vmatmul.mubr.f32.gmra.mrb[0].mxu0 %v65
    %v320 = vpop.f32.mrb[0].mxu0
    %v321 = vadd.f32 0.0, %v320
    %v322 = vpop.f32.mrb[0].mxu0
    %v323 = vadd.f32 0.0, %v322
    %324 = vmatprep.mubr.f32.mxu0 0.0
    %325 = vmatmul.mubr.f32.gmra.mrb[0].mxu0 %v66
    %v326 = vpop.f32.mrb[0].mxu0
    %v327 = vadd.f32 0.0, %v326
    %v328 = vpop.f32.mrb[0].mxu0
    %v329 = vadd.f32 0.0, %v328
    %330 = vmatprep.mubr.f32.mxu0 0.0
    %331 = vmatmul.mubr.f32.gmra.mrb[0].mxu0 %v67
    %v332 = vpop.f32.mrb[0].mxu0
    %v333 = vadd.f32 0.0, %v332
    %v334 = vpop.f32.mrb[0].mxu0
    %v335 = vadd.f32 0.0, %v334
    %336 = vmatprep.mubr.f32.mxu0 0.0
    %337 = vmatmul.mubr.f32.gmra.mrb[0].mxu0 %v68
    %v338 = vpop.f32.mrb[0].mxu0
    %v339 = vadd.f32 0.0, %v338
    %v340 = vpop.f32.mrb[0].mxu0
    %v341 = vadd.f32 0.0, %v340
    %342 = vmatprep.mubr.f32.mxu0 0.0
    %343 = vmatmul.mubr.f32.gmra.mrb[0].mxu0 %v69
    %v344 = vpop.f32.mrb[0].mxu0
    %v345 = vadd.f32 0.0, %v344
    %v346 = vpop.f32.mrb[0].mxu0
    %v347 = vadd.f32 0.0, %v346
    %348 = vmatprep.mubr.f32.mxu0 0.0
    %349 = vmatmul.mubr.f32.gmra.mrb[0].mxu0 %v70
    %v350 = vpop.f32.mrb[0].mxu0
    %v351 = vadd.f32 0.0, %v350
    %v352 = vpop.f32.mrb[0].mxu0
    %v353 = vadd.f32 0.0, %v352
    %354 = vmatprep.mubr.f32.mxu0 0.0
    %355 = vmatmul.mubr.f32.gmra.mrb[0].mxu0 %v71
    %v356 = vpop.f32.mrb[0].mxu0
    %v357 = vadd.f32 0.0, %v356
    %v358 = vpop.f32.mrb[0].mxu0
    %v359 = vadd.f32 0.0, %v358
    %360 = vdwg.mxu0
    %361 = vst [vmem:[#allocation7] sm:$0xff] %v171
    %362 = vst [vmem:[#allocation7 + $0x8] sm:$0xff] %v173
    %363 = vst [vmem:[#allocation7 + $0x10] sm:$0xff] %v177
    %364 = vst [vmem:[#allocation7 + $0x18] sm:$0xff] %v179
    %365 = vst [vmem:[#allocation7 + $0x20] sm:$0xff] %v183
    %366 = vst [vmem:[#allocation7 + $0x28] sm:$0xff] %v185
    %367 = vst [vmem:[#allocation7 + $0x30] sm:$0xff] %v189
    %368 = vst [vmem:[#allocation7 + $0x38] sm:$0xff] %v191
    %369 = vst [vmem:[#allocation7 + $0x40] sm:$0xff] %v195
    %370 = vst [vmem:[#allocation7 + $0x48] sm:$0xff] %v197
    %371 = vst [vmem:[#allocation7 + $0x50] sm:$0xff] %v201
    %372 = vst [vmem:[#allocation7 + $0x58] sm:$0xff] %v203
    %373 = vst [vmem:[#allocation7 + $0x60] sm:$0xff] %v207
    %374 = vst [vmem:[#allocation7 + $0x68] sm:$0xff] %v209
    %375 = vst [vmem:[#allocation7 + $0x70] sm:$0xff] %v213
    %376 = vst [vmem:[#allocation7 + $0x78] sm:$0xff] %v215
    %377 = vst [vmem:[#allocation7 + $0x80] sm:$0xff] %v219
    %378 = vst [vmem:[#allocation7 + $0x88] sm:$0xff] %v221
    %379 = vst [vmem:[#allocation7 + $0x90] sm:$0xff] %v225
    %380 = vst [vmem:[#allocation7 + $0x98] sm:$0xff] %v227
    %381 = vst [vmem:[#allocation7 + $0xa0] sm:$0xff] %v231
    %382 = vst [vmem:[#allocation7 + $0xa8] sm:$0xff] %v233
    %383 = vst [vmem:[#allocation7 + $0xb0] sm:$0xff] %v237
    %384 = vst [vmem:[#allocation7 + $0xb8] sm:$0xff] %v239
    %385 = vst [vmem:[#allocation7 + $0xc0] sm:$0xff] %v243
    %386 = vst [vmem:[#allocation7 + $0xc8] sm:$0xff] %v245
    %387 = vst [vmem:[#allocation7 + $0xd0] sm:$0xff] %v249
    %388 = vst [vmem:[#allocation7 + $0xd8] sm:$0xff] %v251
    %389 = vst [vmem:[#allocation7 + $0xe0] sm:$0xff] %v255
    %390 = vst [vmem:[#allocation7 + $0xe8] sm:$0xff] %v257
    %391 = vst [vmem:[#allocation7 + $0xf0] sm:$0xff] %v261
    %392 = vst [vmem:[#allocation7 + $0xf8] sm:$0xff] %v263
    %393 = vst [vmem:[#allocation7 + $0x100] sm:$0xff] %v267
    %394 = vst [vmem:[#allocation7 + $0x108] sm:$0xff] %v269
    %395 = vst [vmem:[#allocation7 + $0x110] sm:$0xff] %v273
    %396 = vst [vmem:[#allocation7 + $0x118] sm:$0xff] %v275
    %397 = vst [vmem:[#allocation7 + $0x120] sm:$0xff] %v279
    %398 = vst [vmem:[#allocation7 + $0x128] sm:$0xff] %v281
    %399 = vst [vmem:[#allocation7 + $0x130] sm:$0xff] %v285
    %400 = vst [vmem:[#allocation7 + $0x138] sm:$0xff] %v287
    %401 = vst [vmem:[#allocation7 + $0x140] sm:$0xff] %v291
    %402 = vst [vmem:[#allocation7 + $0x148] sm:$0xff] %v293
    %403 = vst [vmem:[#allocation7 + $0x150] sm:$0xff] %v297
    %404 = vst [vmem:[#allocation7 + $0x158] sm:$0xff] %v299
    %405 = vst [vmem:[#allocation7 + $0x160] sm:$0xff] %v303
    %406 = vst [vmem:[#allocation7 + $0x168] sm:$0xff] %v305
    %407 = vst [vmem:[#allocation7 + $0x170] sm:$0xff] %v309
    %408 = vst [vmem:[#allocation7 + $0x178] sm:$0xff] %v311
    %409 = vst [vmem:[#allocation7 + $0x180] sm:$0xff] %v315
    %410 = vst [vmem:[#allocation7 + $0x188] sm:$0xff] %v317
    %411 = vst [vmem:[#allocation7 + $0x190] sm:$0xff] %v321
    %412 = vst [vmem:[#allocation7 + $0x198] sm:$0xff] %v323
    %413 = vst [vmem:[#allocation7 + $0x1a0] sm:$0xff] %v327
    %414 = vst [vmem:[#allocation7 + $0x1a8] sm:$0xff] %v329
    %415 = vst [vmem:[#allocation7 + $0x1b0] sm:$0xff] %v333
    %416 = vst [vmem:[#allocation7 + $0x1b8] sm:$0xff] %v335
    %417 = vst [vmem:[#allocation7 + $0x1c0] sm:$0xff] %v339
    %418 = vst [vmem:[#allocation7 + $0x1c8] sm:$0xff] %v341
    %419 = vst [vmem:[#allocation7 + $0x1d0] sm:$0xff] %v345
    %420 = vst [vmem:[#allocation7 + $0x1d8] sm:$0xff] %v347
    %421 = vst [vmem:[#allocation7 + $0x1e0] sm:$0xff] %v351
    %422 = vst [vmem:[#allocation7 + $0x1e8] sm:$0xff] %v353
    %423 = vst [vmem:[#allocation7 + $0x1f0] sm:$0xff] %v357
    %424 = vst [vmem:[#allocation7 + $0x1f8] sm:$0xff] %v359
    // Predicated region
    $region18: #{tpu_custom_call.1} parent=1 // pred_check
      _
    $region19: #{tpu_custom_call.1} parent=1 // pred_check_branch
      %426 = sbr.rel (0) target = $region21
    $region20: #{tpu_custom_call.1} parent=1 // pred_region
      %s428 = ssub.s32 8192, 8192
      %429 = vsyncadd [#allocation4], %s428
      %s430 = sshll.u32 [#allocation7], 4
      %s431 = int_to_ptr.vmem [resolvable:$true] %s430
      %436 = dma.vmem_to_hbm [thread:$0]  %s431, 8192, %s2, [#allocation4], 256, 256, 16
    $region21: #{tpu_custom_call.1} parent=1 // pred_fallthru
      _
    // Predicated region
    $region22: #{tpu_custom_call.1} parent=1 // pred_check
      _
    $region23: #{tpu_custom_call.1} parent=1 // pred_check_branch
      %438 = sbr.rel (0) target = $region25
    $region24: #{tpu_custom_call.1} parent=1 // pred_region
      %439 = dma.done [#allocation4], 8192
    $region25: #{tpu_custom_call.1} parent=1 // pred_fallthru
      _
    %440 = vsyncpa [#allocation3], 1
    %441 = vsyncpa [#allocation6], 1
    %442 = vsyncpa [#allocation4], 1

</llo_original>
